<compile_context>
chip_gen: v7x
topology: tpu7x:2x2x1
jax: 0.10.0
libtpu: 0.0.40
codegen_flags: <defaults>
</compile_context>

<pallas_src>
import functools

import jax
import jax.numpy as jnp
from jax.experimental import pallas as pl
from jax.experimental.pallas import tpu as pltpu


def hyperspace_kernel(x_ref, scale_ref, shift_ref, refmag_ref, refdirT_ref,
                      dirbias_ref, tables_ref, inv_total_ref, out_ref,
                      *, d_pad: int):
    x = x_ref[...]                                        # [TB, F] f32

    # --- VectorNormalizer (eval): v = x * inv_std + (-mean * inv_std) ----------
    v = x * scale_ref[...] + shift_ref[...]               # [TB, F] f32 (VPU)

    # --- magnitude: f32 XLU lane reduce (no f32 MXU pass, exact) ---------------
    mag = jnp.sqrt(jnp.sum(v * v, axis=-1, keepdims=True))  # [TB, 1]

    # --- direction similarity: argmax_d <v/||v||, d> == argmax_d <v, d> --------
    # bf16 operands on the MXU, f32 accumulate (near-tie argmax may differ from
    # a pure-f32 reference by one index; magnitudes stay in f32).
    # Padded direction lanes carry a -1e30 additive bias so they never win.
    sims = jnp.dot(v.astype(jnp.bfloat16), refdirT_ref[...],
                   preferred_element_type=jnp.float32) + dirbias_ref[...]

    tb = v.shape[0]
    m_pad = refmag_ref.shape[1]

    iota_m = jax.lax.broadcasted_iota(jnp.int32, (tb, m_pad), 1)
    iota_d = jax.lax.broadcasted_iota(jnp.int32, (tb, d_pad), 1)

    # padded magnitude lanes hold 1e30 so they can never win the argmin
    dm = jnp.abs(mag - refmag_ref[...])                   # [TB, Mp]

    # argmin over M / argmax over D (first occurrence on ties) as min-of-iota
    min_dm = jnp.min(dm, axis=-1, keepdims=True)
    mag_idx = jnp.min(jnp.where(dm <= min_dm, iota_m, m_pad),
                      axis=-1, keepdims=True)             # [TB, 1] i32
    max_s = jnp.max(sims, axis=-1, keepdims=True)
    dir_idx = jnp.min(jnp.where(sims >= max_s, iota_d, d_pad),
                      axis=-1, keepdims=True)             # [TB, 1] i32

    # --- two-stage gather: [TB,Mp] @ [Mp,2*Dp] MXU, then lane select-reduce ----
    # tables = [ counts | rank_cum ] along lanes; both are integers (< 2^24),
    # so the one-hot matmul selection stays exact in f32.
    onehot_m = (iota_m == mag_idx).astype(jnp.float32)    # [TB, Mp]
    onehot_d = (iota_d == dir_idx).astype(jnp.float32)    # [TB, Dp]

    rows = jnp.dot(onehot_m, tables_ref[...],
                   preferred_element_type=jnp.float32)    # [TB, 2*Dp]

    batch_counts = jnp.sum(rows[:, :d_pad] * onehot_d, axis=-1, keepdims=True)
    cum = jnp.sum(rows[:, d_pad:] * onehot_d, axis=-1, keepdims=True)

    inv_total = inv_total_ref[0, 0]                       # SMEM scalar 1/max(1,total)
    probs = batch_counts * inv_total
    ranks = (cum - 0.5 * batch_counts) * inv_total

    # --- packed output (minor dim 8): lane 0 = count, 1 = prob, 2 = rank -------
    lane = jax.lax.broadcasted_iota(jnp.int32, out_ref.shape, 1)
    out_ref[...] = jnp.where(lane == 0, batch_counts,
                   jnp.where(lane == 1, probs,
                   jnp.where(lane == 2, ranks, 0.0)))


def _round_up(x: int, m: int) -> int:
    return (x + m - 1) // m * m


def hyperspace_forward(x, mean, var, ref_mags, ref_dirs, counts, *, eps=1e-5):
    """x:[B,F], mean/var:[F], ref_mags:[M], ref_dirs:[D,F], counts:[M,D] int."""
    B, F = x.shape
    M = int(ref_mags.shape[0])
    D = int(ref_dirs.shape[0])

    LANES = 128
    M_pad = _round_up(M, LANES)
    D_pad = _round_up(D, LANES)

    # Batch tiling: cap TB at 256 (v6e amortization) and guarantee >= 2 grid
    # steps so the "parallel" axis can feed both v7x TensorCores.
    B8 = _round_up(B, 8)
    TB = min(256, max(8, _round_up(pl.cdiv(B8, 2), 8)))
    B_pad = _round_up(B8, TB)
    if B_pad // TB < 2:
        B_pad = 2 * TB

    # ---- host-side (plain XLA) preparation ------------------------------------
    xf = jnp.zeros((B_pad, F), jnp.float32).at[:B].set(x.astype(jnp.float32))

    inv_std = jax.lax.rsqrt(var.astype(jnp.float32) + jnp.float32(eps))
    scale = inv_std.reshape(1, F)
    shift = (-mean.astype(jnp.float32) * inv_std).reshape(1, F)

    refmag = jnp.full((1, M_pad), 1e30, jnp.float32).at[0, :M].set(
        ref_mags.astype(jnp.float32))
    refdirT = jnp.zeros((F, D_pad), jnp.bfloat16).at[:, :D].set(
        ref_dirs.T.astype(jnp.bfloat16))                  # [F, Dp] bf16
    dirbias = jnp.where(jnp.arange(D_pad) < D, 0.0, -1e30
                        ).astype(jnp.float32).reshape(1, D_pad)

    # counts + precomputed rank table: rank[m,d] = sum(counts[counts <= counts[m,d]])
    # (zero counts contribute 0, so including them matches the reference).
    counts_f = counts.astype(jnp.float32)                 # exact while < 2^24
    cf = counts_f.reshape(-1)
    srt = jnp.sort(cf)
    csum = jnp.cumsum(srt)
    pos = jnp.searchsorted(srt, cf, side='right')         # #elements <= cf
    rank_f = jnp.where(pos > 0, csum[jnp.maximum(pos - 1, 0)], 0.0
                       ).reshape(M, D)

    counts_pad = jnp.zeros((M_pad, D_pad), jnp.float32).at[:M, :D].set(counts_f)
    rank_pad = jnp.zeros((M_pad, D_pad), jnp.float32).at[:M, :D].set(rank_f)
    tables = jnp.concatenate([counts_pad, rank_pad], axis=1)   # [Mp, 2*Dp]

    total = jnp.sum(counts_f)                             # == sum of non-zero counts
    inv_total = (1.0 / jnp.maximum(1.0, total)).reshape(1, 1).astype(jnp.float32)

    kernel = functools.partial(hyperspace_kernel, d_pad=D_pad)

    out = pl.pallas_call(
        kernel,
        out_shape=jax.ShapeDtypeStruct((B_pad, 8), jnp.float32),
        grid=(B_pad // TB,),
        in_specs=[
            pl.BlockSpec((TB, F), lambda i: (i, 0)),             # x (pipelined)
            pl.BlockSpec((1, F), lambda i: (0, 0)),              # inv_std
            pl.BlockSpec((1, F), lambda i: (0, 0)),              # -mean * inv_std
            pl.BlockSpec((1, M_pad), lambda i: (0, 0)),          # reference magnitudes
            pl.BlockSpec((F, D_pad), lambda i: (0, 0)),          # reference dirs^T (bf16)
            pl.BlockSpec((1, D_pad), lambda i: (0, 0)),          # dir-pad bias row
            pl.BlockSpec((M_pad, 2 * D_pad), lambda i: (0, 0)),  # counts | rank table
            pl.BlockSpec(memory_space=pltpu.MemorySpace.SMEM),   # 1/max(1,total)
        ],
        out_specs=pl.BlockSpec((TB, 8), lambda i: (i, 0)),
        compiler_params=pltpu.CompilerParams(
            dimension_semantics=("parallel",)),
    )(xf, scale, shift, refmag, refdirT, dirbias, tables, inv_total)

    batch_counts = out[:B, 0].astype(jnp.int32)
    probabilities = out[:B, 1]
    ranks = out[:B, 2]
    # HyperSpaceResult(counts, probabilities, ranks)
    return batch_counts, probabilities, ranks


def get_reference_magnitudes(num_magnitude_subsections, num_features):
    # Deterministic synthetic stand-in: magnitudes spread around E||z|| ~ sqrt(F).
    return jnp.sqrt(float(num_features)) * jnp.linspace(
        0.5, 1.5, num_magnitude_subsections, dtype=jnp.float32)


def get_reference_directions(num_features, num_direction_bisections, key):
    # Deterministic synthetic stand-in: 2**bisections random unit directions.
    d = 2 ** num_direction_bisections
    g = jax.random.normal(key, (d, num_features), dtype=jnp.float32)
    return g / jnp.linalg.norm(g, axis=-1, keepdims=True)


if __name__ == "__main__":
    # Small shapes consistent with the module.
    B = 8                       # batch of vectors
    F = 32                      # num_features
    M_SUB = 8                   # num_magnitude_subsections
    BISECT = 4                  # num_direction_bisections -> 16 reference dirs

    key = jax.random.PRNGKey(0)
    k_x, k_dir, k_mean, k_var, k_cnt = jax.random.split(key, 5)

    x = jax.random.normal(k_x, (B, F), dtype=jnp.float32)

    # Deterministic "buffers" (shapes from __init__; counts made non-zero so the
    # probability / rank path is exercised — __init__ zeros would give all-zeros).
    mean = 0.1 * jax.random.normal(k_mean, (F,), dtype=jnp.float32)
    var = jax.random.uniform(k_var, (F,), minval=0.5, maxval=1.5,
                             dtype=jnp.float32)
    ref_mags = get_reference_magnitudes(M_SUB, F)
    ref_dirs = get_reference_directions(F, BISECT, k_dir)
    counts = jax.random.randint(k_cnt, (M_SUB, ref_dirs.shape[0]), 0, 10,
                                dtype=jnp.int32)

    batch_counts, probabilities, ranks = hyperspace_forward(
        x, mean, var, ref_mags, ref_dirs, counts, eps=1e-5)
    jax.block_until_ready((batch_counts, probabilities, ranks))

    assert batch_counts.shape == (B,)
    assert probabilities.shape == (B,)
    assert ranks.shape == (B,)
    print("KERNEL_OK")
</pallas_src>

<mosaic_0001>
module attributes {stable_mosaic.version = 11 : i64} {
  func.func @hyperspace_kernel(%arg0: i32, %arg1: memref<8x32xf32, #tpu.memory_space<vmem>>, %arg2: memref<1x32xf32, #tpu.memory_space<vmem>>, %arg3: memref<1x32xf32, #tpu.memory_space<vmem>>, %arg4: memref<1x128xf32, #tpu.memory_space<vmem>>, %arg5: memref<32x128xbf16, #tpu.memory_space<vmem>>, %arg6: memref<1x128xf32, #tpu.memory_space<vmem>>, %arg7: memref<128x256xf32, #tpu.memory_space<vmem>>, %arg8: memref<1x1xf32, #tpu.memory_space<smem>>, %arg9: memref<8x8xf32, #tpu.memory_space<vmem>>) attributes {dimension_semantics = [#tpu.dimension_semantics<parallel>], iteration_bounds = array<i64: 2>, scalar_prefetch = 0 : i64, scratch_operands = 0 : i64, tpu.core_type = #tpu.core_type<tc>, window_params = [{transform_indices = @transform_0, window_bounds = array<i64: 8, 32>}, {pipeline_mode = #tpu.pipeline_mode<synchronous>, transform_indices = @transform_1, window_bounds = array<i64: 1, 32>}, {pipeline_mode = #tpu.pipeline_mode<synchronous>, transform_indices = @transform_2, window_bounds = array<i64: 1, 32>}, {pipeline_mode = #tpu.pipeline_mode<synchronous>, transform_indices = @transform_3, window_bounds = array<i64: 1, 128>}, {pipeline_mode = #tpu.pipeline_mode<synchronous>, transform_indices = @transform_4, window_bounds = array<i64: 32, 128>}, {pipeline_mode = #tpu.pipeline_mode<synchronous>, transform_indices = @transform_5, window_bounds = array<i64: 1, 128>}, {pipeline_mode = #tpu.pipeline_mode<synchronous>, transform_indices = @transform_6, window_bounds = array<i64: 128, 256>}, {transform_indices = @transform_7, window_bounds = array<i64: 1, 1>}, {transform_indices = @transform_8, window_bounds = array<i64: 8, 8>}]} {
    %c0 = arith.constant 0 : index
    %c0_0 = arith.constant 0 : index
    %0 = vector.load %arg1[%c0, %c0_0] : memref<8x32xf32, #tpu.memory_space<vmem>>, vector<8x32xf32>
    %c0_1 = arith.constant 0 : index
    %c0_2 = arith.constant 0 : index
    %1 = vector.load %arg2[%c0_1, %c0_2] : memref<1x32xf32, #tpu.memory_space<vmem>>, vector<1x32xf32>
    %2 = vector.broadcast %1 : vector<1x32xf32> to vector<8x32xf32>
    %3 = arith.mulf %0, %2 : vector<8x32xf32>
    %c0_3 = arith.constant 0 : index
    %c0_4 = arith.constant 0 : index
    %4 = vector.load %arg3[%c0_3, %c0_4] : memref<1x32xf32, #tpu.memory_space<vmem>>, vector<1x32xf32>
    %5 = vector.broadcast %4 : vector<1x32xf32> to vector<8x32xf32>
    %6 = arith.addf %3, %5 : vector<8x32xf32>
    %7 = arith.mulf %6, %6 : vector<8x32xf32>
    %cst = arith.constant dense<0.000000e+00> : vector<8xf32>
    %8 = vector.multi_reduction <add>, %7, %cst [1] : vector<8x32xf32> to vector<8xf32>
    %9 = vector.shape_cast %8 : vector<8xf32> to vector<8x1xf32>
    %10 = math.sqrt %9 : vector<8x1xf32>
    %11 = arith.truncf %6 : vector<8x32xf32> to vector<8x32xbf16>
    %c0_5 = arith.constant 0 : index
    %c0_6 = arith.constant 0 : index
    %12 = vector.load %arg5[%c0_5, %c0_6] : memref<32x128xbf16, #tpu.memory_space<vmem>>, vector<32x128xbf16>
    %cst_7 = arith.constant dense<0.000000e+00> : vector<8x128xf32>
    %13 = tpu.matmul %11, %12, %cst_7 {dimension_numbers = #tpu.dot_dimension_numbers<[1], [0], [0], [1], [0, 0, 1, 1], [], []>} : vector<8x32xbf16>, vector<32x128xbf16>, vector<8x128xf32> -> vector<8x128xf32>
    %c0_8 = arith.constant 0 : index
    %c0_9 = arith.constant 0 : index
    %14 = vector.load %arg6[%c0_8, %c0_9] : memref<1x128xf32, #tpu.memory_space<vmem>>, vector<1x128xf32>
    %15 = vector.broadcast %14 : vector<1x128xf32> to vector<8x128xf32>
    %16 = arith.addf %13, %15 : vector<8x128xf32>
    %17 = tpu.iota {dimensions = array<i32: 1>} : vector<8x128xi32>
    %18 = tpu.iota {dimensions = array<i32: 1>} : vector<8x128xi32>
    %c0_10 = arith.constant 0 : index
    %c0_11 = arith.constant 0 : index
    %19 = vector.load %arg4[%c0_10, %c0_11] : memref<1x128xf32, #tpu.memory_space<vmem>>, vector<1x128xf32>
    %20 = vector.broadcast %10 : vector<8x1xf32> to vector<8x128xf32>
    %21 = vector.broadcast %19 : vector<1x128xf32> to vector<8x128xf32>
    %22 = arith.subf %20, %21 : vector<8x128xf32>
    %23 = math.absf %22 : vector<8x128xf32>
    %cst_12 = arith.constant dense<0x7F800000> : vector<8xf32>
    %24 = vector.multi_reduction <minimumf>, %23, %cst_12 [1] : vector<8x128xf32> to vector<8xf32>
    %25 = vector.shape_cast %24 : vector<8xf32> to vector<8x1xf32>
    %26 = vector.broadcast %25 : vector<8x1xf32> to vector<8x128xf32>
    %27 = arith.cmpf ole, %23, %26 : vector<8x128xf32>
    %c128_i32 = arith.constant 128 : i32
    %28 = vector.broadcast %c128_i32 : i32 to vector<8x128xi32>
    %29 = arith.select %27, %17, %28 : vector<8x128xi1>, vector<8x128xi32>
    %cst_13 = arith.constant dense<2147483647> : vector<8xi32>
    %30 = vector.multi_reduction <minsi>, %29, %cst_13 [1] : vector<8x128xi32> to vector<8xi32>
    %31 = vector.shape_cast %30 : vector<8xi32> to vector<8x1xi32>
    %cst_14 = arith.constant dense<0xFF800000> : vector<8xf32>
    %32 = vector.multi_reduction <maximumf>, %16, %cst_14 [1] : vector<8x128xf32> to vector<8xf32>
    %33 = vector.shape_cast %32 : vector<8xf32> to vector<8x1xf32>
    %34 = vector.broadcast %33 : vector<8x1xf32> to vector<8x128xf32>
    %35 = arith.cmpf oge, %16, %34 : vector<8x128xf32>
    %c128_i32_15 = arith.constant 128 : i32
    %36 = vector.broadcast %c128_i32_15 : i32 to vector<8x128xi32>
    %37 = arith.select %35, %18, %36 : vector<8x128xi1>, vector<8x128xi32>
    %cst_16 = arith.constant dense<2147483647> : vector<8xi32>
    %38 = vector.multi_reduction <minsi>, %37, %cst_16 [1] : vector<8x128xi32> to vector<8xi32>
    %39 = vector.shape_cast %38 : vector<8xi32> to vector<8x1xi32>
    %40 = vector.broadcast %31 : vector<8x1xi32> to vector<8x128xi32>
    %41 = arith.cmpi eq, %17, %40 : vector<8x128xi32>
    %42 = arith.extui %41 : vector<8x128xi1> to vector<8x128xi32>
    %43 = arith.sitofp %42 : vector<8x128xi32> to vector<8x128xf32>
    %44 = vector.broadcast %39 : vector<8x1xi32> to vector<8x128xi32>
    %45 = arith.cmpi eq, %18, %44 : vector<8x128xi32>
    %46 = arith.extui %45 : vector<8x128xi1> to vector<8x128xi32>
    %47 = arith.sitofp %46 : vector<8x128xi32> to vector<8x128xf32>
    %c0_17 = arith.constant 0 : index
    %c0_18 = arith.constant 0 : index
    %48 = vector.load %arg7[%c0_17, %c0_18] : memref<128x256xf32, #tpu.memory_space<vmem>>, vector<128x256xf32>
    %cst_19 = arith.constant dense<0.000000e+00> : vector<8x256xf32>
    %49 = tpu.matmul %43, %48, %cst_19 {dimension_numbers = #tpu.dot_dimension_numbers<[1], [0], [0], [1], [0, 0, 1, 1], [], []>} : vector<8x128xf32>, vector<128x256xf32>, vector<8x256xf32> -> vector<8x256xf32>
    %50 = vector.extract_strided_slice %49 {offsets = [0, 0], sizes = [8, 128], strides = [1, 1]} : vector<8x256xf32> to vector<8x128xf32>
    %51 = arith.mulf %50, %47 : vector<8x128xf32>
    %cst_20 = arith.constant dense<0.000000e+00> : vector<8xf32>
    %52 = vector.multi_reduction <add>, %51, %cst_20 [1] : vector<8x128xf32> to vector<8xf32>
    %53 = vector.shape_cast %52 : vector<8xf32> to vector<8x1xf32>
    %54 = vector.extract_strided_slice %49 {offsets = [0, 128], sizes = [8, 128], strides = [1, 1]} : vector<8x256xf32> to vector<8x128xf32>
    %55 = arith.mulf %54, %47 : vector<8x128xf32>
    %cst_21 = arith.constant dense<0.000000e+00> : vector<8xf32>
    %56 = vector.multi_reduction <add>, %55, %cst_21 [1] : vector<8x128xf32> to vector<8xf32>
    %57 = vector.shape_cast %56 : vector<8xf32> to vector<8x1xf32>
    %c0_22 = arith.constant 0 : index
    %c0_23 = arith.constant 0 : index
    %58 = memref.load %arg8[%c0_22, %c0_23] : memref<1x1xf32, #tpu.memory_space<smem>>
    %59 = vector.broadcast %58 : f32 to vector<8x1xf32>
    %60 = arith.mulf %53, %59 : vector<8x1xf32>
    %cst_24 = arith.constant 5.000000e-01 : f32
    %61 = vector.broadcast %cst_24 : f32 to vector<8x1xf32>
    %62 = arith.mulf %61, %53 : vector<8x1xf32>
    %63 = arith.subf %57, %62 : vector<8x1xf32>
    %64 = vector.broadcast %58 : f32 to vector<8x1xf32>
    %65 = arith.mulf %63, %64 : vector<8x1xf32>
    %66 = tpu.iota {dimensions = array<i32: 1>} : vector<8x8xi32>
    %c0_i32 = arith.constant 0 : i32
    %67 = vector.broadcast %c0_i32 : i32 to vector<8x8xi32>
    %68 = arith.cmpi eq, %66, %67 : vector<8x8xi32>
    %c1_i32 = arith.constant 1 : i32
    %69 = vector.broadcast %c1_i32 : i32 to vector<8x8xi32>
    %70 = arith.cmpi eq, %66, %69 : vector<8x8xi32>
    %c2_i32 = arith.constant 2 : i32
    %71 = vector.broadcast %c2_i32 : i32 to vector<8x8xi32>
    %72 = arith.cmpi eq, %66, %71 : vector<8x8xi32>
    %cst_25 = arith.constant 0.000000e+00 : f32
    %73 = vector.shape_cast %65 : vector<8x1xf32> to vector<8x1xf32>
    %74 = vector.broadcast %73 : vector<8x1xf32> to vector<8x8xf32>
    %75 = vector.broadcast %cst_25 : f32 to vector<8x8xf32>
    %76 = arith.select %72, %74, %75 : vector<8x8xi1>, vector<8x8xf32>
    %77 = vector.shape_cast %60 : vector<8x1xf32> to vector<8x1xf32>
    %78 = vector.broadcast %77 : vector<8x1xf32> to vector<8x8xf32>
    %79 = arith.select %70, %78, %76 : vector<8x8xi1>, vector<8x8xf32>
    %80 = vector.shape_cast %53 : vector<8x1xf32> to vector<8x1xf32>
    %81 = vector.broadcast %80 : vector<8x1xf32> to vector<8x8xf32>
    %82 = arith.select %68, %81, %79 : vector<8x8xi1>, vector<8x8xf32>
    %c0_26 = arith.constant 0 : index
    %c0_27 = arith.constant 0 : index
    %83 = vector.load %arg9[%c0_26, %c0_27] : memref<8x8xf32, #tpu.memory_space<vmem>>, vector<8x8xf32>
    tpu.vector_store %arg9[%c0_26, %c0_27], %82 {strides = array<i32>} : memref<8x8xf32, #tpu.memory_space<vmem>>, vector<8x8xf32>,
    return
  }
  func.func @transform_0(%arg0: i32) -> (i32, i32) {
    %c0_i32 = arith.constant 0 : i32
    %c0_i32_0 = arith.constant 0 : i32
    return %arg0, %c0_i32 : i32, i32
  }
  func.func @transform_1(%arg0: i32) -> (i32, i32) {
    %c0_i32 = arith.constant 0 : i32
    %c0_i32_0 = arith.constant 0 : i32
    %c0_i32_1 = arith.constant 0 : i32
    return %c0_i32, %c0_i32_0 : i32, i32
  }
  func.func @transform_2(%arg0: i32) -> (i32, i32) {
    %c0_i32 = arith.constant 0 : i32
    %c0_i32_0 = arith.constant 0 : i32
    %c0_i32_1 = arith.constant 0 : i32
    return %c0_i32, %c0_i32_0 : i32, i32
  }
  func.func @transform_3(%arg0: i32) -> (i32, i32) {
    %c0_i32 = arith.constant 0 : i32
    %c0_i32_0 = arith.constant 0 : i32
    %c0_i32_1 = arith.constant 0 : i32
    return %c0_i32, %c0_i32_0 : i32, i32
  }
  func.func @transform_4(%arg0: i32) -> (i32, i32) {
    %c0_i32 = arith.constant 0 : i32
    %c0_i32_0 = arith.constant 0 : i32
    %c0_i32_1 = arith.constant 0 : i32
    return %c0_i32, %c0_i32_0 : i32, i32
  }
  func.func @transform_5(%arg0: i32) -> (i32, i32) {
    %c0_i32 = arith.constant 0 : i32
    %c0_i32_0 = arith.constant 0 : i32
    %c0_i32_1 = arith.constant 0 : i32
    return %c0_i32, %c0_i32_0 : i32, i32
  }
  func.func @transform_6(%arg0: i32) -> (i32, i32) {
    %c0_i32 = arith.constant 0 : i32
    %c0_i32_0 = arith.constant 0 : i32
    %c0_i32_1 = arith.constant 0 : i32
    return %c0_i32, %c0_i32_0 : i32, i32
  }
  func.func @transform_7(%arg0: i32) -> (i32, i32) {
    %c0_i32 = arith.constant 0 : i32
    %c0_i32_0 = arith.constant 0 : i32
    %c0_i32_1 = arith.constant 0 : i32
    return %c0_i32, %c0_i32_0 : i32, i32
  }
  func.func @transform_8(%arg0: i32) -> (i32, i32) {
    %c0_i32 = arith.constant 0 : i32
    %c0_i32_0 = arith.constant 0 : i32
    return %arg0, %c0_i32 : i32, i32
  }
}

</mosaic_0001>

<llo_original>
// kernel: tpu_custom_call.1
$region0: #{tpu_custom_call.1}
  #allocation0 [shape = 'u32[]', space=smem, size = 0x4, offset = 0x4, fixed_abs, tag = 'smem constant byte address 0x4 - core index']
  #allocation1 [shape = 'u32[144,128]{1,0:T(1,128)}', space=vmem, size = 0x12000, scoped, tag = 'internal scratch']
  #allocation2 [shape = 'f32[1,1]{1,0:T(1,128)S(6)}', space=smem, size = 0x200, scoped, tag = 'scoped memory for tpu_custom_call.1']
  %s0 = inlined_call_operand.hbm [shape: f32[16,32], index: 0, kind: input, shape index: {}]
  %s1 = inlined_call_operand.vmem [shape: f32[1,32], index: 1, kind: input, shape index: {}]
  %s2 = inlined_call_operand.vmem [shape: f32[1,32], index: 2, kind: input, shape index: {}]
  %s3 = inlined_call_operand.hbm [shape: f32[1,128], index: 3, kind: input, shape index: {}]
  %s4 = inlined_call_operand.vmem [shape: bf16[32,128], index: 4, kind: input, shape index: {}]
  %s5 = inlined_call_operand.vmem [shape: f32[1,128], index: 5, kind: input, shape index: {}]
  %s6 = inlined_call_operand.hbm [shape: f32[128,256], index: 6, kind: input, shape index: {}]
  %s7 = inlined_call_operand.<no memory space> [shape: f32[1,1], index: 7, kind: input, shape index: {}]
  %s8 = inlined_call_operand.vmem [shape: f32[16,8], index: 8, kind: output, shape index: {}]
  %s9 = sld [smem:[#allocation0]]
  $region77: #{tpu_custom_call.1} parent=0
    _
  %s11 = ssub.s32 1, %s9
  %s12 = scalar_select 0, %s11, %s9
  %13 = sst [smem:[#allocation2]] %s7
  $region1: #{tpu_custom_call.1} parent=0
    #allocation3 [shape = 'u8[8192]{0}', space=vmem, size = 0x2000, scoped, tag = 'input window, operand 0']
    #allocation4 [shape = 's32[2]{0}', space=sflag, size = 0x8, scoped, tag = 'scoped memory for tpu_custom_call.1']
    #allocation5 [shape = 'u8[512]{0}', space=vmem, size = 0x400, scoped, tag = 'input window, operand 3, single buffered']
    #allocation6 [shape = 's32[1]{0}', space=sflag, size = 0x4, scoped, tag = 'scoped memory for tpu_custom_call.1']
    #allocation7 [shape = 'u8[131072]{0}', space=vmem, size = 0x20000, scoped, tag = 'input window, operand 6, single buffered']
    %14 = vsyncpa [#allocation4], 0
    %s15 = scalar_lea.sflag [#allocation4], 1
    %16 = vsyncpa %s15, 0
    %17 = vsyncpa [#allocation6], 0
    loop: start=0, step=1, limit=4
    $region2: #{tpu_custom_call.1} parent=1 // loop_pre_header
      _
    $region3: #{tpu_custom_call.1} parent=1 // loop_header
      %s19 = sphi 0, %s23
      %p20 = scmp.ge.s32.totalorder %s19, 4
      %s29 = sphi 0, %s31
      %s32 = sphi 0, %s29
      %s33 = sphi 0, %s32
      %s49 = sphi 0, %s33
      %s53 = sphi 0, %s53
      %s55 = sphi 0, %s53
      %s56 = sphi 0, %s55
      %s70 = sphi 0, %s56
      %s74 = sphi 0, %s74
      %s76 = sphi 0, %s74
      %s77 = sphi 0, %s76
      %s91 = sphi 0, %s77
      %s95 = sphi 0, %s95
      %s97 = sphi 0, %s95
      %s98 = sphi 0, %s97
      %s112 = sphi 0, %s98
      %s116 = sphi 0, %s116
      %s118 = sphi 0, %s116
      %s119 = sphi 0, %s118
      %s133 = sphi 0, %s119
      %s137 = sphi 0, %s137
      %s139 = sphi 0, %s137
      %s140 = sphi 0, %s139
      %s154 = sphi 0, %s140
      %s158 = sphi 0, %s158
      %s160 = sphi 0, %s158
      %s161 = sphi 0, %s160
      %s175 = sphi 0, %s161
      %s179 = sphi 0, %s179
      %s181 = sphi 0, %s179
      %s182 = sphi 0, %s181
      %s196 = sphi 0, %s182
      %s202 = sphi 0, %s204
      %s205 = sphi 0, %s202
      %s206 = sphi 0, %s205
      %s222 = sphi 0, %s206
    $region4: #{tpu_custom_call.1} parent=1 // loop_header_branch
      %22 = sbr.rel (%p20) target = $region8
    $region5: #{tpu_custom_call.1} parent=1 // loop_body
      %s24 = ssub.s32 %s19, 1
      %s25 = ssub.s32 %s19, 2
      %s26 = sadd.s32 %s19, 1
      %s27 = ssub.s32 %s19, %s26
      %p28 = scmp.eq.s32.totalorder %s27, 0
      %s30 = sadd.s32 %s29, 1
      %s31 = scalar_select %p28, %s29, %s30
      %p34 = pneg %p28
      %p35 = scmp.eq.s32.totalorder %s19, 1
      %p36 = por %p34, %p35
      %p37 = scmp.ne.s32.totalorder %s29, %s32
      %p38 = scmp.eq.s32.totalorder %s19, 0
      %p39 = por %p37, %p38
      %p40 = scmp.ne.s32.totalorder %s29, %s32
      %p41 = scmp.eq.s32.totalorder %s24, 1
      %p42 = por %p40, %p41
      %p43 = scmp.ne.s32.totalorder %s32, %s33
      %p44 = scmp.eq.s32.totalorder %s24, 0
      %p45 = por %p43, %p44
      %p46 = scmp.ne.s32.totalorder %s32, %s33
      %p47 = scmp.eq.s32.totalorder %s25, 1
      %p48 = por %p46, %p47
      %p50 = scmp.ne.s32.totalorder %s33, %s49
      %p51 = scmp.eq.s32.totalorder %s25, 0
      %p52 = por %p50, %p51
      %s54 = sadd.s32 %s53, 1
      %p57 = scmp.eq.s32.totalorder %s19, 1
      %p58 = scmp.ne.s32.totalorder %s53, %s55
      %p59 = scmp.eq.s32.totalorder %s19, 0
      %p60 = por %p58, %p59
      %p61 = scmp.ne.s32.totalorder %s53, %s55
      %p62 = scmp.eq.s32.totalorder %s24, 1
      %p63 = por %p61, %p62
      %p64 = scmp.ne.s32.totalorder %s55, %s56
      %p65 = scmp.eq.s32.totalorder %s24, 0
      %p66 = por %p64, %p65
      %p67 = scmp.ne.s32.totalorder %s55, %s56
      %p68 = scmp.eq.s32.totalorder %s25, 1
      %p69 = por %p67, %p68
      %p71 = scmp.ne.s32.totalorder %s56, %s70
      %p72 = scmp.eq.s32.totalorder %s25, 0
      %p73 = por %p71, %p72
      %s75 = sadd.s32 %s74, 1
      %p78 = scmp.eq.s32.totalorder %s19, 1
      %p79 = scmp.ne.s32.totalorder %s74, %s76
      %p80 = scmp.eq.s32.totalorder %s19, 0
      %p81 = por %p79, %p80
      %p82 = scmp.ne.s32.totalorder %s74, %s76
      %p83 = scmp.eq.s32.totalorder %s24, 1
      %p84 = por %p82, %p83
      %p85 = scmp.ne.s32.totalorder %s76, %s77
      %p86 = scmp.eq.s32.totalorder %s24, 0
      %p87 = por %p85, %p86
      %p88 = scmp.ne.s32.totalorder %s76, %s77
      %p89 = scmp.eq.s32.totalorder %s25, 1
      %p90 = por %p88, %p89
      %p92 = scmp.ne.s32.totalorder %s77, %s91
      %p93 = scmp.eq.s32.totalorder %s25, 0
      %p94 = por %p92, %p93
      %s96 = sadd.s32 %s95, 1
      %p99 = scmp.eq.s32.totalorder %s19, 1
      %p100 = scmp.ne.s32.totalorder %s95, %s97
      %p101 = scmp.eq.s32.totalorder %s19, 0
      %p102 = por %p100, %p101
      %p103 = scmp.ne.s32.totalorder %s95, %s97
      %p104 = scmp.eq.s32.totalorder %s24, 1
      %p105 = por %p103, %p104
      %p106 = scmp.ne.s32.totalorder %s97, %s98
      %p107 = scmp.eq.s32.totalorder %s24, 0
      %p108 = por %p106, %p107
      %p109 = scmp.ne.s32.totalorder %s97, %s98
      %p110 = scmp.eq.s32.totalorder %s25, 1
      %p111 = por %p109, %p110
      %p113 = scmp.ne.s32.totalorder %s98, %s112
      %p114 = scmp.eq.s32.totalorder %s25, 0
      %p115 = por %p113, %p114
      %s117 = sadd.s32 %s116, 1
      %p120 = scmp.eq.s32.totalorder %s19, 1
      %p121 = scmp.ne.s32.totalorder %s116, %s118
      %p122 = scmp.eq.s32.totalorder %s19, 0
      %p123 = por %p121, %p122
      %p124 = scmp.ne.s32.totalorder %s116, %s118
      %p125 = scmp.eq.s32.totalorder %s24, 1
      %p126 = por %p124, %p125
      %p127 = scmp.ne.s32.totalorder %s118, %s119
      %p128 = scmp.eq.s32.totalorder %s24, 0
      %p129 = por %p127, %p128
      %p130 = scmp.ne.s32.totalorder %s118, %s119
      %p131 = scmp.eq.s32.totalorder %s25, 1
      %p132 = por %p130, %p131
      %p134 = scmp.ne.s32.totalorder %s119, %s133
      %p135 = scmp.eq.s32.totalorder %s25, 0
      %p136 = por %p134, %p135
      %s138 = sadd.s32 %s137, 1
      %p141 = scmp.eq.s32.totalorder %s19, 1
      %p142 = scmp.ne.s32.totalorder %s137, %s139
      %p143 = scmp.eq.s32.totalorder %s19, 0
      %p144 = por %p142, %p143
      %p145 = scmp.ne.s32.totalorder %s137, %s139
      %p146 = scmp.eq.s32.totalorder %s24, 1
      %p147 = por %p145, %p146
      %p148 = scmp.ne.s32.totalorder %s139, %s140
      %p149 = scmp.eq.s32.totalorder %s24, 0
      %p150 = por %p148, %p149
      %p151 = scmp.ne.s32.totalorder %s139, %s140
      %p152 = scmp.eq.s32.totalorder %s25, 1
      %p153 = por %p151, %p152
      %p155 = scmp.ne.s32.totalorder %s140, %s154
      %p156 = scmp.eq.s32.totalorder %s25, 0
      %p157 = por %p155, %p156
      %s159 = sadd.s32 %s158, 1
      %p162 = scmp.eq.s32.totalorder %s19, 1
      %p163 = scmp.ne.s32.totalorder %s158, %s160
      %p164 = scmp.eq.s32.totalorder %s19, 0
      %p165 = por %p163, %p164
      %p166 = scmp.ne.s32.totalorder %s158, %s160
      %p167 = scmp.eq.s32.totalorder %s24, 1
      %p168 = por %p166, %p167
      %p169 = scmp.ne.s32.totalorder %s160, %s161
      %p170 = scmp.eq.s32.totalorder %s24, 0
      %p171 = por %p169, %p170
      %p172 = scmp.ne.s32.totalorder %s160, %s161
      %p173 = scmp.eq.s32.totalorder %s25, 1
      %p174 = por %p172, %p173
      %p176 = scmp.ne.s32.totalorder %s161, %s175
      %p177 = scmp.eq.s32.totalorder %s25, 0
      %p178 = por %p176, %p177
      %s180 = sadd.s32 %s179, 1
      %p183 = scmp.eq.s32.totalorder %s19, 1
      %p184 = scmp.ne.s32.totalorder %s179, %s181
      %p185 = scmp.eq.s32.totalorder %s19, 0
      %p186 = por %p184, %p185
      %p187 = scmp.ne.s32.totalorder %s179, %s181
      %p188 = scmp.eq.s32.totalorder %s24, 1
      %p189 = por %p187, %p188
      %p190 = scmp.ne.s32.totalorder %s181, %s182
      %p191 = scmp.eq.s32.totalorder %s24, 0
      %p192 = por %p190, %p191
      %p193 = scmp.ne.s32.totalorder %s181, %s182
      %p194 = scmp.eq.s32.totalorder %s25, 1
      %p195 = por %p193, %p194
      %p197 = scmp.ne.s32.totalorder %s182, %s196
      %p198 = scmp.eq.s32.totalorder %s25, 0
      %p199 = por %p197, %p198
      %s200 = ssub.s32 %s19, %s26
      %p201 = scmp.eq.s32.totalorder %s200, 0
      %s203 = sadd.s32 %s202, 1
      %s204 = scalar_select %p201, %s202, %s203
      %p207 = pneg %p201
      %p208 = scmp.eq.s32.totalorder %s19, 1
      %p209 = por %p207, %p208
      %p210 = scmp.ne.s32.totalorder %s202, %s205
      %p211 = scmp.eq.s32.totalorder %s19, 0
      %p212 = por %p210, %p211
      %p213 = scmp.ne.s32.totalorder %s202, %s205
      %p214 = scmp.eq.s32.totalorder %s24, 1
      %p215 = por %p213, %p214
      %p216 = scmp.ne.s32.totalorder %s205, %s206
      %p217 = scmp.eq.s32.totalorder %s24, 0
      %p218 = por %p216, %p217
      %p219 = scmp.ne.s32.totalorder %s205, %s206
      %p220 = scmp.eq.s32.totalorder %s25, 1
      %p221 = por %p219, %p220
      %p223 = scmp.ne.s32.totalorder %s206, %s222
      %p224 = scmp.eq.s32.totalorder %s25, 0
      %p225 = por %p223, %p224
      %p226 = scmp.le.s32.totalorder 1, %s19
      %p227 = scmp.lt.s32.totalorder %s19, 3
      %p228 = pnand %p226, %p227
      %p229 = pneg %p228
      // Predicated region
      $region9: #{tpu_custom_call.1} parent=5 // pred_check
        _
      $region10: #{tpu_custom_call.1} parent=5 // pred_check_branch
        %231 = sbr.rel (%p228) target = $region12
      $region11: #{tpu_custom_call.1} parent=5 // pred_region
        %s232 = ssub.s32 %s19, 1
        // Predicated region
        $region13: #{tpu_custom_call.1} parent=11 // pred_check
          %p233 = pneg %p66
        $region14: #{tpu_custom_call.1} parent=11 // pred_check_branch
          %235 = sbr.rel (%p233) target = $region16
        $region15: #{tpu_custom_call.1} parent=11 // pred_region
          _
        $region16: #{tpu_custom_call.1} parent=11 // pred_fallthru
          _
        // Predicated region
        $region17: #{tpu_custom_call.1} parent=11 // pred_check
          %p236 = pneg %p87
        $region18: #{tpu_custom_call.1} parent=11 // pred_check_branch
          %238 = sbr.rel (%p236) target = $region20
        $region19: #{tpu_custom_call.1} parent=11 // pred_region
          _
        $region20: #{tpu_custom_call.1} parent=11 // pred_fallthru
          _
        // Predicated region
        $region21: #{tpu_custom_call.1} parent=11 // pred_check
          %p239 = pneg %p108
        $region22: #{tpu_custom_call.1} parent=11 // pred_check_branch
          %241 = sbr.rel (%p239) target = $region24
        $region23: #{tpu_custom_call.1} parent=11 // pred_region
          %s243 = ssub.s32 16, 16
          %244 = vsyncadd [#allocation6], %s243
          %s246 = sshll.u32 [#allocation5], 4
          %s247 = int_to_ptr.vmem [resolvable:$true] %s246
          %249 = dma.hbm_to_vmem [thread:$0]  %s3, 16, %s247, [#allocation6]
        $region24: #{tpu_custom_call.1} parent=11 // pred_fallthru
          _
        // Predicated region
        $region25: #{tpu_custom_call.1} parent=11 // pred_check
          %p250 = pneg %p129
        $region26: #{tpu_custom_call.1} parent=11 // pred_check_branch
          %252 = sbr.rel (%p250) target = $region28
        $region27: #{tpu_custom_call.1} parent=11 // pred_region
          _
        $region28: #{tpu_custom_call.1} parent=11 // pred_fallthru
          _
        // Predicated region
        $region29: #{tpu_custom_call.1} parent=11 // pred_check
          %p253 = pneg %p150
        $region30: #{tpu_custom_call.1} parent=11 // pred_check_branch
          %255 = sbr.rel (%p253) target = $region32
        $region31: #{tpu_custom_call.1} parent=11 // pred_region
          _
        $region32: #{tpu_custom_call.1} parent=11 // pred_fallthru
          _
        // Predicated region
        $region33: #{tpu_custom_call.1} parent=11 // pred_check
          %p256 = pneg %p171
        $region34: #{tpu_custom_call.1} parent=11 // pred_check_branch
          %258 = sbr.rel (%p256) target = $region36
        $region35: #{tpu_custom_call.1} parent=11 // pred_region
          %s260 = ssub.s32 4096, 4096
          %261 = vsyncadd [#allocation6], %s260
          %s262 = sshll.u32 [#allocation7], 4
          %s263 = int_to_ptr.vmem [resolvable:$true] %s262
          %268 = dma.hbm_to_vmem [thread:$0]  %s6, 4096, %s263, [#allocation6], 256, 256, 16
        $region36: #{tpu_custom_call.1} parent=11 // pred_fallthru
          _
        // Predicated region
        $region37: #{tpu_custom_call.1} parent=11 // pred_check
          %p269 = pneg %p192
        $region38: #{tpu_custom_call.1} parent=11 // pred_check_branch
          %271 = sbr.rel (%p269) target = $region40
        $region39: #{tpu_custom_call.1} parent=11 // pred_region
          _
        $region40: #{tpu_custom_call.1} parent=11 // pred_fallthru
          _
      $region12: #{tpu_custom_call.1} parent=5 // pred_fallthru
        _
      %p272 = scmp.lt.s32.totalorder %s19, 2
      // Predicated region
      $region41: #{tpu_custom_call.1} parent=5 // pred_check
        %p273 = pneg %p272
      $region42: #{tpu_custom_call.1} parent=5 // pred_check_branch
        %275 = sbr.rel (%p273) target = $region44
      $region43: #{tpu_custom_call.1} parent=5 // pred_region
        // Predicated region
        $region45: #{tpu_custom_call.1} parent=43 // pred_check
          %p276 = pneg %p39
        $region46: #{tpu_custom_call.1} parent=43 // pred_check_branch
          %278 = sbr.rel (%p276) target = $region48
        $region47: #{tpu_custom_call.1} parent=43 // pred_region
          %s279 = sand.u32 %s29, 1
          %s280 = scalar_lea.sflag [#allocation4], %s279
          %s281 = sand.u32 %s29, 1
          %s282 = smul.addr %s281, 8
          %s283 = scalar_lea.vmem [#allocation3], %s282
          %s285 = ssub.s32 128, 128
          %286 = vsyncadd %s280, %s285
          %s287 = smul.addr %s19, 128
          %s288 = scalar_lea.hbm %s0, %s287
          %s290 = sshll.u32 %s283, 4
          %s291 = int_to_ptr.vmem [resolvable:$true] %s290
          %293 = dma.hbm_to_vmem [thread:$0]  %s288, 128, %s291, %s280
        $region48: #{tpu_custom_call.1} parent=43 // pred_fallthru
          _
      $region44: #{tpu_custom_call.1} parent=5 // pred_fallthru
        _
      %p294 = scmp.le.s32.totalorder 1, %s19
      %p295 = scmp.lt.s32.totalorder %s19, 3
      %p296 = pnand %p294, %p295
      %p297 = pneg %p296
      // Predicated region
      $region49: #{tpu_custom_call.1} parent=5 // pred_check
        _
      $region50: #{tpu_custom_call.1} parent=5 // pred_check_branch
        %299 = sbr.rel (%p296) target = $region52
      $region51: #{tpu_custom_call.1} parent=5 // pred_region
        %s300 = ssub.s32 %s19, 1
        %s301 = sand.u32 %s32, 1
        %s302 = scalar_lea.sflag [#allocation4], %s301
        %s303 = sand.u32 %s32, 1
        %s304 = smul.addr %s303, 8
        %s305 = scalar_lea.vmem [#allocation3], %s304
        // Predicated region
        $region53: #{tpu_custom_call.1} parent=51 // pred_check
          %p306 = pneg %p45
        $region54: #{tpu_custom_call.1} parent=51 // pred_check_branch
          %308 = sbr.rel (%p306) target = $region56
        $region55: #{tpu_custom_call.1} parent=51 // pred_region
          %309 = dma.done %s302, 128
        $region56: #{tpu_custom_call.1} parent=51 // pred_fallthru
          _
        // Predicated region
        $region57: #{tpu_custom_call.1} parent=51 // pred_check
          %p310 = pneg %p108
        $region58: #{tpu_custom_call.1} parent=51 // pred_check_branch
          %312 = sbr.rel (%p310) target = $region60
        $region59: #{tpu_custom_call.1} parent=51 // pred_region
          %313 = dma.done [#allocation6], 16
        $region60: #{tpu_custom_call.1} parent=51 // pred_fallthru
          _
        // Predicated region
        $region61: #{tpu_custom_call.1} parent=51 // pred_check
          %p314 = pneg %p171
        $region62: #{tpu_custom_call.1} parent=51 // pred_check_branch
          %316 = sbr.rel (%p314) target = $region64
        $region63: #{tpu_custom_call.1} parent=51 // pred_region
          %317 = dma.done [#allocation6], 4096
        $region64: #{tpu_custom_call.1} parent=51 // pred_fallthru
          _
        %s318 = sand.u32 %s32, 1
        %s319 = scalar_lea.sflag [#allocation4], %s318
        %s320 = sand.u32 %s32, 1
        %s321 = smul.addr %s320, 8
        %s322 = scalar_lea.vmem [#allocation3], %s321
        %p323 = pneg %p45
        %p324 = pneg %p42
        %p325 = pneg %p66
        %p326 = pneg %p63
        %p327 = pneg %p87
        %p328 = pneg %p84
        %p329 = pneg %p108
        %p330 = pneg %p105
        %p331 = pneg %p129
        %p332 = pneg %p126
        %p333 = pneg %p150
        %p334 = pneg %p147
        %p335 = pneg %p171
        %p336 = pneg %p168
        %p337 = pneg %p192
        %p338 = pneg %p189
        %p339 = pneg %p218
        %p340 = pneg %p215
        %p341 = scmp.lt.s32.totalorder %s24, 1
        %s342 = scalar_select %p341, %s24, 1
        %s343 = smul.addr %s342, 8
        %s344 = scalar_lea.vmem %s8, %s343
        %p345 = scmp.lt.s32.totalorder %s24, 1
        %s346 = scalar_select %p345, %s24, 1
        %s347 = smul.addr %s346, 8
        %s348 = scalar_lea.vmem %s8, %s347
        %v350 = vld [vmem:[%s305] sm:$0xff]
        %v351 = vld [vmem:[%s1] sm:$0x1]
        %v353 = vlaneseq
        %v354 = vshrl.u32 %v353, 7
        %v355 = vsub.s32 0, %v354
        %v356 = vrot.slane %v351, %v355
        %v358 = vmul.f32 %v350, %v356
        %v359 = vld [vmem:[%s2] sm:$0x1]
        %v361 = vlaneseq
        %v362 = vshrl.u32 %v361, 7
        %v363 = vsub.s32 0, %v362
        %v364 = vrot.slane %v359, %v363
        %v366 = vadd.f32 %v358, %v364
        %v367 = vmul.f32 %v366, %v366
        %vm368 = vcmask 261120
        %v369 = vsel %vm368, %v367, 0.0
        %370 = vadd.xlane.f32.xlu0 %v369
        %v371 = vpop.xlane.xlu0 %370
        %v372 = vrsqrt.pop %v371
        %v373 = vmul.f32 %v371, %v372
        %vm374 = vcmp.eq.f32.partialorder %v371, inf
        %v375 = vsel %vm374, %v371, %v373
        %vm376 = vcmp.eq.f32.partialorder %v371, 0.0
        %v377 = vand.u32 %v371, 2147483648
        %v378 = vsel %vm376, %v377, %v375
        %v379 = vpack.c.bf16 %v366, %v366
        %v380 = vld [vmem:[%s4] sm:$0xf]
        %v381 = vld [vmem:[%s4 + $0x4] sm:$0xf]
        %v382 = vld [vmem:[%s4 + $0x8] sm:$0xf]
        %v383 = vld [vmem:[%s4 + $0xc] sm:$0xf]
        %v384 = vld [vmem:[%s5] sm:$0x1]
        %v386 = vlaneseq
        %v387 = vshrl.u32 %v386, 7
        %v388 = vsub.s32 0, %v387
        %v389 = vrot.slane %v384, %v388
        %v395 = vunpack.c.l.b16 %v380
        %v396 = vunpack.c.l.b16 %v381
        %v397 = vunpack.c.l.b16 %v382
        %v398 = vunpack.c.l.b16 %v383
        %v399 = vpack.c.b16 %v396, %v395
        %v400 = vpack.c.b16 %v398, %v397
        %v404 = vsel %vm368, %v379, 0
        %406 = vmatprep.subr.bf16.mxu0 0
        %407 = vmatpush1.bf16.msra.mxu0 %v399
        %408 = vmatprep.subr.bf16.mxu0 0
        %409 = vmatpush1.bf16.msra.mxu0 %v400
        %410 = vmatprep.subr.bf16.mxu0 0
        %411 = vmatpush1.bf16.msra.mxu0 0
        %412 = vmatprep.subr.bf16.mxu0 0
        %413 = vmatpush1.bf16.msra.mxu0 0
        %414 = vmatprep.subr.bf16.mxu0 0
        %415 = vmatpush1.bf16.msra.mxu0 0
        %416 = vmatprep.subr.bf16.mxu0 0
        %417 = vmatpush1.bf16.msra.mxu0 0
        %418 = vmatprep.subr.bf16.mxu0 0
        %419 = vmatpush1.bf16.msra.mxu0 0
        %420 = vmatprep.subr.bf16.mxu0 0
        %421 = vmatpush1.bf16.msra.mxu0 0
        %422 = vmatprep.subr.bf16.mxu0 0
        %423 = vmatpush1.bf16.msra.mxu0 0
        %424 = vmatprep.subr.bf16.mxu0 0
        %425 = vmatpush1.bf16.msra.mxu0 0
        %426 = vmatprep.subr.bf16.mxu0 0
        %427 = vmatpush1.bf16.msra.mxu0 0
        %428 = vmatprep.subr.bf16.mxu0 0
        %429 = vmatpush1.bf16.msra.mxu0 0
        %430 = vmatprep.subr.bf16.mxu0 0
        %431 = vmatpush1.bf16.msra.mxu0 0
        %432 = vmatprep.subr.bf16.mxu0 0
        %433 = vmatpush1.bf16.msra.mxu0 0
        %434 = vmatprep.subr.bf16.mxu0 0
        %435 = vmatpush1.bf16.msra.mxu0 0
        %436 = vmatprep.subr.bf16.mxu0 0
        %437 = vmatpush1.bf16.msra.mxu0 0
        %438 = vmatprep.mubr.bf16.mxu0 0
        %439 = vmatmul.mubr.bf16.gmra.mrb[0].mxu0 %v404
        %v440 = vpop.f32.mrb[0].mxu0
        %v441 = vadd.f32 %v389, %v440
        %v442 = vpop.f32.mrb[0].mxu0
        %v443 = vpop.f32.mrb[0].mxu0
        %v444 = vpop.f32.mrb[0].mxu0
        %445 = vdwg.mxu0
        %v446 = vlaneseq
        %v447 = vand.u32 %v446, 127
        %v448 = vld [vmem:[#allocation5] sm:$0x1]
        %v450 = vlaneseq
        %v451 = vshrl.u32 %v450, 7
        %v452 = vsub.s32 0, %v451
        %v453 = vrot.slane %v448, %v452
        %v455 = vsub.f32 %v378, %v453
        %v456 = vand.u32 2147483647, %v455
        %457 = vmin.xlane.f32.xlu0 %v456
        %v458 = vpop.xlane.xlu0 %457
        %vm459 = vcmp.le.f32.partialorder %v456, %v458
        %v460 = vsel %vm459, %v447, 128
        %v461 = vand.u32 %v460, 65535
        %v462 = vshra.s32 %v460, 16
        %v463 = vcvt.s32.f32 %v461
        %v464 = vcvt.s32.f32 %v462
        %465 = vmin.xlane.f32.xlu0 %v464
        %v466 = vpop.xlane.xlu0 %465
        %vm467 = vcmp.eq.f32.partialorder %v464, %v466
        %v468 = vsel %vm467, %v463, inf
        %469 = vmin.xlane.f32.xlu0 %v468
        %v470 = vpop.xlane.xlu0 %469
        %v471 = vcvt.f32.s32 %v470
        %v472 = vcvt.f32.s32 %v466
        %v473 = vshll.u32 %v472, 16
        %v474 = vadd.s32 %v473, %v471
        %475 = vmax.xlane.f32.xlu0 %v441
        %v476 = vpop.xlane.xlu0 %475
        %vm477 = vcmp.ge.f32.partialorder %v441, %v476
        %v478 = vsel %vm477, %v447, 128
        %v479 = vand.u32 %v478, 65535
        %v480 = vshra.s32 %v478, 16
        %v481 = vcvt.s32.f32 %v479
        %v482 = vcvt.s32.f32 %v480
        %483 = vmin.xlane.f32.xlu0 %v482
        %v484 = vpop.xlane.xlu0 %483
        %vm485 = vcmp.eq.f32.partialorder %v482, %v484
        %v486 = vsel %vm485, %v481, inf
        %487 = vmin.xlane.f32.xlu0 %v486
        %v488 = vpop.xlane.xlu0 %487
        %v489 = vcvt.f32.s32 %v488
        %v490 = vcvt.f32.s32 %v484
        %v491 = vshll.u32 %v490, 16
        %v492 = vadd.s32 %v491, %v489
        %vm493 = vcmp.eq.s32.totalorder %v447, %v474
        %v494 = vsel %vm493, 1, 0
        %v495 = vcvt.s32.f32 %v494
        %vm496 = vcmp.eq.s32.totalorder %v447, %v492
        %v497 = vsel %vm496, 1, 0
        %v498 = vcvt.s32.f32 %v497
        %v499 = vld [vmem:[#allocation7] sm:$0xff]
        %v500 = vld [vmem:[#allocation7 + $0x8] sm:$0xff]
        %v501 = vld [vmem:[#allocation7 + $0x10] sm:$0xff]
        %v502 = vld [vmem:[#allocation7 + $0x18] sm:$0xff]
        %v503 = vld [vmem:[#allocation7 + $0x20] sm:$0xff]
        %v504 = vld [vmem:[#allocation7 + $0x28] sm:$0xff]
        %v505 = vld [vmem:[#allocation7 + $0x30] sm:$0xff]
        %v506 = vld [vmem:[#allocation7 + $0x38] sm:$0xff]
        %v507 = vld [vmem:[#allocation7 + $0x40] sm:$0xff]
        %v508 = vld [vmem:[#allocation7 + $0x48] sm:$0xff]
        %v509 = vld [vmem:[#allocation7 + $0x50] sm:$0xff]
        %v510 = vld [vmem:[#allocation7 + $0x58] sm:$0xff]
        %v511 = vld [vmem:[#allocation7 + $0x60] sm:$0xff]
        %v512 = vld [vmem:[#allocation7 + $0x68] sm:$0xff]
        %v513 = vld [vmem:[#allocation7 + $0x70] sm:$0xff]
        %v514 = vld [vmem:[#allocation7 + $0x78] sm:$0xff]
        %v515 = vld [vmem:[#allocation7 + $0x80] sm:$0xff]
        %v516 = vld [vmem:[#allocation7 + $0x88] sm:$0xff]
        %v517 = vld [vmem:[#allocation7 + $0x90] sm:$0xff]
        %v518 = vld [vmem:[#allocation7 + $0x98] sm:$0xff]
        %v519 = vld [vmem:[#allocation7 + $0xa0] sm:$0xff]
        %v520 = vld [vmem:[#allocation7 + $0xa8] sm:$0xff]
        %v521 = vld [vmem:[#allocation7 + $0xb0] sm:$0xff]
        %v522 = vld [vmem:[#allocation7 + $0xb8] sm:$0xff]
        %v523 = vld [vmem:[#allocation7 + $0xc0] sm:$0xff]
        %v524 = vld [vmem:[#allocation7 + $0xc8] sm:$0xff]
        %v525 = vld [vmem:[#allocation7 + $0xd0] sm:$0xff]
        %v526 = vld [vmem:[#allocation7 + $0xd8] sm:$0xff]
        %v527 = vld [vmem:[#allocation7 + $0xe0] sm:$0xff]
        %v528 = vld [vmem:[#allocation7 + $0xe8] sm:$0xff]
        %v529 = vld [vmem:[#allocation7 + $0xf0] sm:$0xff]
        %v530 = vld [vmem:[#allocation7 + $0xf8] sm:$0xff]
        %531 = vmatprep.subr.mxu0 %v500
        %532 = vmatpush1.msra.mxu0 %v499
        %533 = vmatprep.subr.mxu0 %v502
        %534 = vmatpush1.msra.mxu0 %v501
        %535 = vmatprep.subr.mxu0 %v504
        %536 = vmatpush1.msra.mxu0 %v503
        %537 = vmatprep.subr.mxu0 %v506
        %538 = vmatpush1.msra.mxu0 %v505
        %539 = vmatprep.subr.mxu0 %v508
        %540 = vmatpush1.msra.mxu0 %v507
        %541 = vmatprep.subr.mxu0 %v510
        %542 = vmatpush1.msra.mxu0 %v509
        %543 = vmatprep.subr.mxu0 %v512
        %544 = vmatpush1.msra.mxu0 %v511
        %545 = vmatprep.subr.mxu0 %v514
        %546 = vmatpush1.msra.mxu0 %v513
        %547 = vmatprep.subr.mxu0 %v516
        %548 = vmatpush1.msra.mxu0 %v515
        %549 = vmatprep.subr.mxu0 %v518
        %550 = vmatpush1.msra.mxu0 %v517
        %551 = vmatprep.subr.mxu0 %v520
        %552 = vmatpush1.msra.mxu0 %v519
        %553 = vmatprep.subr.mxu0 %v522
        %554 = vmatpush1.msra.mxu0 %v521
        %555 = vmatprep.subr.mxu0 %v524
        %556 = vmatpush1.msra.mxu0 %v523
        %557 = vmatprep.subr.mxu0 %v526
        %558 = vmatpush1.msra.mxu0 %v525
        %559 = vmatprep.subr.mxu0 %v528
        %560 = vmatpush1.msra.mxu0 %v527
        %561 = vmatprep.subr.mxu0 %v530
        %562 = vmatpush1.msra.mxu0 %v529
        %563 = vmatprep.subr.mxu0 0.0
        %564 = vmatpush1.msra.mxu0 0.0
        %565 = vmatprep.subr.mxu0 0.0
        %566 = vmatpush1.msra.mxu0 0.0
        %567 = vmatprep.subr.mxu0 0.0
        %568 = vmatpush1.msra.mxu0 0.0
        %569 = vmatprep.subr.mxu0 0.0
        %570 = vmatpush1.msra.mxu0 0.0
        %571 = vmatprep.subr.mxu0 0.0
        %572 = vmatpush1.msra.mxu0 0.0
        %573 = vmatprep.subr.mxu0 0.0
        %574 = vmatpush1.msra.mxu0 0.0
        %575 = vmatprep.subr.mxu0 0.0
        %576 = vmatpush1.msra.mxu0 0.0
        %577 = vmatprep.subr.mxu0 0.0
        %578 = vmatpush1.msra.mxu0 0.0
        %579 = vmatprep.subr.mxu0 0.0
        %580 = vmatpush1.msra.mxu0 0.0
        %581 = vmatprep.subr.mxu0 0.0
        %582 = vmatpush1.msra.mxu0 0.0
        %583 = vmatprep.subr.mxu0 0.0
        %584 = vmatpush1.msra.mxu0 0.0
        %585 = vmatprep.subr.mxu0 0.0
        %586 = vmatpush1.msra.mxu0 0.0
        %587 = vmatprep.subr.mxu0 0.0
        %588 = vmatpush1.msra.mxu0 0.0
        %589 = vmatprep.subr.mxu0 0.0
        %590 = vmatpush1.msra.mxu0 0.0
        %591 = vmatprep.subr.mxu0 0.0
        %592 = vmatpush1.msra.mxu0 0.0
        %593 = vmatprep.subr.mxu0 0.0
        %594 = vmatpush1.msra.mxu0 0.0
        %595 = vmatprep.mubr.f32.mxu0 0.0
        %596 = vmatmul.mubr.f32.gmra.mrb[0].mxu0 %v495
        %v597 = vpop.f32.mrb[0].mxu0
        %v598 = vadd.f32 0.0, %v597
        %v599 = vpop.f32.mrb[0].mxu0
        %v600 = vadd.f32 0.0, %v599
        %601 = vdwg.mxu0
        %v602 = vmul.f32 %v598, %v498
        %603 = vadd.xlane.f32.xlu0 %v602
        %v604 = vpop.xlane.xlu0 %603
        %v605 = vmul.f32 %v600, %v498
        %606 = vadd.xlane.f32.xlu0 %v605
        %v607 = vpop.xlane.xlu0 %606
        %s608 = sld [smem:[#allocation2]]
        %v609 = vstv %s608
        %v610 = vmul.f32 %v604, %v609
        %v611 = vmul.f32 %v604, 0.5
        %v612 = vsub.f32 %v607, %v611
        %v613 = vmul.f32 %v612, %v609
        %vm614 = vcmp.eq.s32.totalorder %v447, 0
        %vm615 = vcmp.eq.s32.totalorder %v447, 1
        %vm616 = vcmp.eq.s32.totalorder %v447, 2
        %v617 = vsel %vm616, %v613, 0.0
        %v618 = vsel %vm615, %v610, %v617
        %v619 = vsel %vm614, %v604, %v618
        %vm620 = vcmask 64512
        %621 = vst.msk [vmem:[%s348] sm:$0xff] %vm620, %v619
        %p622 = scmp.lt.s32.totalorder %s24, 1
        %s623 = scalar_select %p622, %s24, 1
        %s624 = smul.addr %s623, 8
        %s625 = scalar_lea.vmem %s8, %s624
        // Predicated region
        $region65: #{tpu_custom_call.1} parent=51 // pred_check
          %p626 = pneg %p215
        $region66: #{tpu_custom_call.1} parent=51 // pred_check_branch
          %628 = sbr.rel (%p626) target = $region68
        $region67: #{tpu_custom_call.1} parent=51 // pred_region
          _
        $region68: #{tpu_custom_call.1} parent=51 // pred_fallthru
          _
      $region52: #{tpu_custom_call.1} parent=5 // pred_fallthru
        _
      %p629 = scmp.le.s32.totalorder 2, %s19
      // Predicated region
      $region69: #{tpu_custom_call.1} parent=5 // pred_check
        %p630 = pneg %p629
      $region70: #{tpu_custom_call.1} parent=5 // pred_check_branch
        %632 = sbr.rel (%p630) target = $region72
      $region71: #{tpu_custom_call.1} parent=5 // pred_region
        %s633 = ssub.s32 %s19, 2
        // Predicated region
        $region73: #{tpu_custom_call.1} parent=71 // pred_check
          %p634 = pneg %p221
        $region74: #{tpu_custom_call.1} parent=71 // pred_check_branch
          %636 = sbr.rel (%p634) target = $region76
        $region75: #{tpu_custom_call.1} parent=71 // pred_region
          %p637 = scmp.lt.s32.totalorder %s25, 1
          %s638 = scalar_select %p637, %s25, 1
          %s639 = smul.addr %s638, 8
          %s640 = scalar_lea.vmem %s8, %s639
        $region76: #{tpu_custom_call.1} parent=71 // pred_fallthru
          _
      $region72: #{tpu_custom_call.1} parent=5 // pred_fallthru
        _
    $region6: #{tpu_custom_call.1} parent=1 // loop_footer
      %s23 = sadd.s32 1, %s19
    $region7: #{tpu_custom_call.1} parent=1 // loop_footer_branch
      %18 = sbr.rel target = $region3
    $region8: #{tpu_custom_call.1} parent=1 // loop_exit
      _
    %641 = vsyncpa [#allocation4], 1
    %s642 = scalar_lea.sflag [#allocation4], 1
    %643 = vsyncpa %s642, 1
    %644 = vsyncpa [#allocation6], 1

</llo_original>
